<compile_context>
chip_gen: v7x
topology: tpu7x:2x2x1
jax: 0.10.0
libtpu: 0.0.40
codegen_flags: <defaults>
</compile_context>

<pallas_src>
import functools

import jax
import jax.numpy as jnp
from jax import lax
from jax.experimental import pallas as pl
from jax.experimental.pallas import tpu as pltpu


# ---------------------------------------------------------------------------
# In-kernel helpers
# ---------------------------------------------------------------------------

def _lane_box_sum(x, r, w):
    """W-pass: (2r+1)-term masked shift-and-add along the lane axis.

    x: (H, bc*W) with bc planes lane-stacked.  The per-shift mask keeps each
    sum inside its own W-wide plane segment (zero outside the image), so there
    is no cross-plane bleed and no wrap-around.  Runs on XLU (roll) + VPU only.
    """
    _, l_ = x.shape
    col = lax.broadcasted_iota(jnp.int32, (1, l_), 1) % w
    acc = None
    for s in range(-r, r + 1):
        shifted = x if s == 0 else pltpu.roll(x, shift=(-s) % l_, axis=1)
        valid = jnp.logical_and(col + s >= 0, col + s < w)
        term = jnp.where(valid, shifted, 0)
        acc = term if acc is None else acc + term
    return acc


def _sublane_box_sum(t, r):
    """H-pass (roll variant): masked shift-and-add along the sublane axis."""
    h_, _ = t.shape
    row = lax.broadcasted_iota(jnp.int32, (h_, 1), 0)
    acc = None
    for s in range(-r, r + 1):
        shifted = t if s == 0 else pltpu.roll(t, shift=(-s) % h_, axis=0)
        valid = jnp.logical_and(row + s >= 0, row + s < h_)
        term = jnp.where(valid, shifted, 0)
        acc = term if acc is None else acc + term
    return acc


def _kernel_matmul_h(r, w, x_ref, bh_ref, o_ref):
    # Native-dtype operands (no f32 upcast of x); f32 accumulation on the MXU.
    t = _lane_box_sum(x_ref[...], r, w)                 # W-pass: XLU + VPU
    out = jnp.dot(bh_ref[...], t.astype(bh_ref.dtype),  # H-pass: MXU, f32 acc
                  preferred_element_type=jnp.float32)
    o_ref[...] = out.astype(o_ref.dtype)


def _kernel_roll_h(r, w, x_ref, o_ref):
    # Fully separable roll path: 2*(2r+1) adds/pixel, no MXU at all
    # (preferred for large planes and on v5e, which has no fast f32 MXU mode).
    t = _lane_box_sum(x_ref[...], r, w)
    o_ref[...] = _sublane_box_sum(t, r).astype(o_ref.dtype)


# ---------------------------------------------------------------------------
# Wrapper-side helpers
# ---------------------------------------------------------------------------

def _band(n, r, dtype):
    """0/1 band matrix band[i,k] = 1 iff |i-k| <= r (exact in bf16/f32)."""
    i = lax.broadcasted_iota(jnp.int32, (n, n), 0)
    j = lax.broadcasted_iota(jnp.int32, (n, n), 1)
    return (jnp.abs(i - j) <= r).astype(dtype)


def _pick_bc(nc, w, max_lanes=1024):
    """Planes batched per grid step (lane-stacked).

    Priority: (1) keep >= 2 grid steps so both v7x TensorCores get work,
    (2) lane-dense bc*w (multiple of 128), (3) fewer steps (amortize the
    ~0.35us/step pipeline overhead).  Lane cap 1024 suits v6e/v5e VMEM.
    """
    if w >= 128:
        return 1
    cands = [bc for bc in range(1, nc + 1) if nc % bc == 0 and bc * w <= max_lanes]
    if not cands:
        cands = [1]

    def score(bc):
        g = nc // bc
        return (g >= 2, (bc * w) % 128 == 0, -g)

    return max(cands, key=score)


def _vmem_limit(blk_bytes, band_bytes):
    """Generation-aware scoped-VMEM budget."""
    try:
        phys = pltpu.get_tpu_info().vmem_capacity_bytes
    except Exception:
        phys = 64 << 20  # assume the smallest (v7x) if the query is unavailable
    budget = 4 * blk_bytes + 4 * band_bytes + (2 << 20)
    return int(max(4 << 20, min(budget, (phys * 5) // 8)))


@functools.partial(jax.jit, static_argnames=("r", "h_pass"))
def box_filter(x, r, h_pass="auto"):
    """x: (N, C, H, W). Returns in-bounds box-filter window sums, same shape."""
    N, C, H, W = x.shape
    assert r >= 0 and H > 2 * r and W > 2 * r, "spatial dims must exceed 2*r"
    if not jnp.issubdtype(x.dtype, jnp.floating):
        x = x.astype(jnp.float32)

    if h_pass == "auto":
        # Banded matmul only while the band is a single small MXU tile; larger
        # planes use the roll path ((2r+1) adds/pixel vs H MACs/pixel).
        h_pass = "matmul" if H <= 256 else "roll"

    nc = N * C
    bc = _pick_bc(nc, W)
    g = nc // bc
    L = bc * W

    # Lane-stack bc planes per group.  Under jit this layout plumbing fuses
    # with the surrounding graph (keep the whole guided-filter pipeline jitted
    # so it doesn't become standalone HBM round trips).
    xg = x.reshape(g, bc, H, W).transpose(0, 2, 1, 3).reshape(g, H, L)

    in_arrays = [xg]
    in_specs = [pl.BlockSpec((None, H, L), lambda i: (i, 0, 0))]
    band_bytes = 0
    if h_pass == "matmul":
        b_h = _band(H, r, x.dtype)                       # resident, native dtype
        in_arrays.append(b_h)
        in_specs.append(pl.BlockSpec((H, H), lambda i: (0, 0)))
        band_bytes = H * H * b_h.dtype.itemsize
        kernel = functools.partial(_kernel_matmul_h, r, W)
    else:
        kernel = functools.partial(_kernel_roll_h, r, W)

    blk_bytes = H * L * x.dtype.itemsize

    out = pl.pallas_call(
        kernel,
        out_shape=jax.ShapeDtypeStruct((g, H, L), x.dtype),
        grid=(g,),
        in_specs=in_specs,
        out_specs=pl.BlockSpec((None, H, L), lambda i: (i, 0, 0)),
        compiler_params=pltpu.CompilerParams(
            dimension_semantics=("parallel",),
            vmem_limit_bytes=_vmem_limit(blk_bytes, band_bytes)),
    )(*in_arrays)

    # Undo the lane stacking.
    return out.reshape(g, H, bc, W).transpose(0, 2, 1, 3).reshape(N, C, H, W)


def box_filter_ref(x, r):
    """Pure-JAX reference matching the PyTorch cumsum+diff formulation."""
    cx = jnp.cumsum(x, axis=2)
    left = cx[:, :, r:2 * r + 1]
    middle = cx[:, :, 2 * r + 1:] - cx[:, :, :-2 * r - 1]
    right = cx[:, :, -1:] - cx[:, :, -2 * r - 1:-r - 1]
    dx = jnp.concatenate([left, middle, right], axis=2)

    cy = jnp.cumsum(dx, axis=3)
    left = cy[:, :, :, r:2 * r + 1]
    middle = cy[:, :, :, 2 * r + 1:] - cy[:, :, :, :-2 * r - 1]
    right = cy[:, :, :, -1:] - cy[:, :, :, -2 * r - 1:-r - 1]
    return jnp.concatenate([left, middle, right], axis=3)


if __name__ == "__main__":
    r = 3
    key = jax.random.PRNGKey(0)
    x = jax.random.normal(key, (2, 4, 16, 16), dtype=jnp.float32)

    ref = box_filter_ref(x, r)

    # Default dispatch: roll W-pass + banded-matmul H-pass (small plane).
    out_mm = jax.block_until_ready(box_filter(x, r=r))
    # Fully separable roll path (large-plane / v5e variant), validated here too.
    out_rl = jax.block_until_ready(box_filter(x, r=r, h_pass="roll"))

    assert out_mm.shape == ref.shape == (2, 4, 16, 16)
    assert out_rl.shape == ref.shape
    # Summation order differs from torch.cumsum; agreement within tolerance.
    assert jnp.allclose(out_mm, ref, atol=1e-4, rtol=1e-4)
    assert jnp.allclose(out_rl, ref, atol=1e-4, rtol=1e-4)

    print("KERNEL_OK")
</pallas_src>

<mosaic_0001>
module attributes {stable_mosaic.version = 11 : i64} {
  func.func @_kernel_matmul_h(%arg0: i32, %arg1: memref<1x16x64xf32, #tpu.memory_space<vmem>>, %arg2: memref<16x16xf32, #tpu.memory_space<vmem>>, %arg3: memref<1x16x64xf32, #tpu.memory_space<vmem>>) attributes {dimension_semantics = [#tpu.dimension_semantics<parallel>], iteration_bounds = array<i64: 2>, scalar_prefetch = 0 : i64, scratch_operands = 0 : i64, tpu.core_type = #tpu.core_type<tc>, window_params = [{transform_indices = @transform_0, window_bounds = array<i64: 1, 16, 64>}, {pipeline_mode = #tpu.pipeline_mode<synchronous>, transform_indices = @transform_1, window_bounds = array<i64: 16, 16>}, {transform_indices = @transform_2, window_bounds = array<i64: 1, 16, 64>}]} {
    %c0 = arith.constant 0 : index
    %c0_0 = arith.constant 0 : index
    %c0_1 = arith.constant 0 : index
    %0 = vector.load %arg1[%c0, %c0_0, %c0_1] : memref<1x16x64xf32, #tpu.memory_space<vmem>>, vector<1x16x64xf32>
    %1 = vector.shape_cast %0 : vector<1x16x64xf32> to vector<16x64xf32>
    %2 = tpu.iota {dimensions = array<i32: 1>} : vector<1x64xi32>
    %c16_i32 = arith.constant 16 : i32
    %c0_i32 = arith.constant 0 : i32
    %3 = arith.cmpi eq, %c16_i32, %c0_i32 : i32
    %c1_i32 = arith.constant 1 : i32
    %4 = arith.select %3, %c1_i32, %c16_i32 : i32
    %5 = vector.broadcast %4 : i32 to vector<1x64xi32>
    %6 = arith.remsi %2, %5 : vector<1x64xi32>
    %c0_i32_2 = arith.constant 0 : i32
    %7 = vector.broadcast %c0_i32_2 : i32 to vector<1x64xi32>
    %8 = arith.cmpi ne, %6, %7 : vector<1x64xi32>
    %c0_i32_3 = arith.constant 0 : i32
    %9 = vector.broadcast %c0_i32_3 : i32 to vector<1x64xi32>
    %10 = arith.cmpi slt, %6, %9 : vector<1x64xi32>
    %c0_i32_4 = arith.constant 0 : i32
    %11 = arith.cmpi slt, %4, %c0_i32_4 : i32
    %12 = vector.broadcast %11 : i1 to vector<1x64xi1>
    %13 = vector.broadcast %12 : vector<1x64xi1> to vector<1x64xi1>
    %14 = arith.xori %10, %13 : vector<1x64xi1>
    %15 = arith.andi %14, %8 : vector<1x64xi1>
    %16 = vector.broadcast %4 : i32 to vector<1x64xi32>
    %17 = arith.addi %6, %16 : vector<1x64xi32>
    %18 = arith.select %15, %17, %6 : vector<1x64xi1>, vector<1x64xi32>
    %c3_i32 = arith.constant 3 : i32
    %19 = tpu.dynamic_rotate %1 by %c3_i32 dim 1 : vector<16x64xf32>, i32 -> vector<16x64xf32>
    %c-3_i32 = arith.constant -3 : i32
    %20 = vector.broadcast %c-3_i32 : i32 to vector<1x64xi32>
    %21 = arith.addi %18, %20 : vector<1x64xi32>
    %c0_i32_5 = arith.constant 0 : i32
    %22 = vector.broadcast %c0_i32_5 : i32 to vector<1x64xi32>
    %23 = arith.cmpi sge, %21, %22 : vector<1x64xi32>
    %c-3_i32_6 = arith.constant -3 : i32
    %24 = vector.broadcast %c-3_i32_6 : i32 to vector<1x64xi32>
    %25 = arith.addi %18, %24 : vector<1x64xi32>
    %c16_i32_7 = arith.constant 16 : i32
    %26 = vector.broadcast %c16_i32_7 : i32 to vector<1x64xi32>
    %27 = arith.cmpi slt, %25, %26 : vector<1x64xi32>
    %28 = arith.andi %23, %27 : vector<1x64xi1>
    %c0_i32_8 = arith.constant 0 : i32
    %29 = arith.sitofp %c0_i32_8 : i32 to f32
    %30 = vector.shape_cast %28 : vector<1x64xi1> to vector<1x64xi1>
    %31 = vector.broadcast %30 : vector<1x64xi1> to vector<16x64xi1>
    %32 = vector.broadcast %29 : f32 to vector<16x64xf32>
    %33 = arith.select %31, %19, %32 : vector<16x64xi1>, vector<16x64xf32>
    %c2_i32 = arith.constant 2 : i32
    %34 = tpu.dynamic_rotate %1 by %c2_i32 dim 1 : vector<16x64xf32>, i32 -> vector<16x64xf32>
    %c-2_i32 = arith.constant -2 : i32
    %35 = vector.broadcast %c-2_i32 : i32 to vector<1x64xi32>
    %36 = arith.addi %18, %35 : vector<1x64xi32>
    %c0_i32_9 = arith.constant 0 : i32
    %37 = vector.broadcast %c0_i32_9 : i32 to vector<1x64xi32>
    %38 = arith.cmpi sge, %36, %37 : vector<1x64xi32>
    %c-2_i32_10 = arith.constant -2 : i32
    %39 = vector.broadcast %c-2_i32_10 : i32 to vector<1x64xi32>
    %40 = arith.addi %18, %39 : vector<1x64xi32>
    %c16_i32_11 = arith.constant 16 : i32
    %41 = vector.broadcast %c16_i32_11 : i32 to vector<1x64xi32>
    %42 = arith.cmpi slt, %40, %41 : vector<1x64xi32>
    %43 = arith.andi %38, %42 : vector<1x64xi1>
    %c0_i32_12 = arith.constant 0 : i32
    %44 = arith.sitofp %c0_i32_12 : i32 to f32
    %45 = vector.shape_cast %43 : vector<1x64xi1> to vector<1x64xi1>
    %46 = vector.broadcast %45 : vector<1x64xi1> to vector<16x64xi1>
    %47 = vector.broadcast %44 : f32 to vector<16x64xf32>
    %48 = arith.select %46, %34, %47 : vector<16x64xi1>, vector<16x64xf32>
    %49 = arith.addf %33, %48 : vector<16x64xf32>
    %c1_i32_13 = arith.constant 1 : i32
    %50 = tpu.dynamic_rotate %1 by %c1_i32_13 dim 1 : vector<16x64xf32>, i32 -> vector<16x64xf32>
    %c-1_i32 = arith.constant -1 : i32
    %51 = vector.broadcast %c-1_i32 : i32 to vector<1x64xi32>
    %52 = arith.addi %18, %51 : vector<1x64xi32>
    %c0_i32_14 = arith.constant 0 : i32
    %53 = vector.broadcast %c0_i32_14 : i32 to vector<1x64xi32>
    %54 = arith.cmpi sge, %52, %53 : vector<1x64xi32>
    %c-1_i32_15 = arith.constant -1 : i32
    %55 = vector.broadcast %c-1_i32_15 : i32 to vector<1x64xi32>
    %56 = arith.addi %18, %55 : vector<1x64xi32>
    %c16_i32_16 = arith.constant 16 : i32
    %57 = vector.broadcast %c16_i32_16 : i32 to vector<1x64xi32>
    %58 = arith.cmpi slt, %56, %57 : vector<1x64xi32>
    %59 = arith.andi %54, %58 : vector<1x64xi1>
    %c0_i32_17 = arith.constant 0 : i32
    %60 = arith.sitofp %c0_i32_17 : i32 to f32
    %61 = vector.shape_cast %59 : vector<1x64xi1> to vector<1x64xi1>
    %62 = vector.broadcast %61 : vector<1x64xi1> to vector<16x64xi1>
    %63 = vector.broadcast %60 : f32 to vector<16x64xf32>
    %64 = arith.select %62, %50, %63 : vector<16x64xi1>, vector<16x64xf32>
    %65 = arith.addf %49, %64 : vector<16x64xf32>
    %c0_i32_18 = arith.constant 0 : i32
    %66 = vector.broadcast %c0_i32_18 : i32 to vector<1x64xi32>
    %67 = arith.addi %18, %66 : vector<1x64xi32>
    %c0_i32_19 = arith.constant 0 : i32
    %68 = vector.broadcast %c0_i32_19 : i32 to vector<1x64xi32>
    %69 = arith.cmpi sge, %67, %68 : vector<1x64xi32>
    %c0_i32_20 = arith.constant 0 : i32
    %70 = vector.broadcast %c0_i32_20 : i32 to vector<1x64xi32>
    %71 = arith.addi %18, %70 : vector<1x64xi32>
    %c16_i32_21 = arith.constant 16 : i32
    %72 = vector.broadcast %c16_i32_21 : i32 to vector<1x64xi32>
    %73 = arith.cmpi slt, %71, %72 : vector<1x64xi32>
    %74 = arith.andi %69, %73 : vector<1x64xi1>
    %c0_i32_22 = arith.constant 0 : i32
    %75 = arith.sitofp %c0_i32_22 : i32 to f32
    %76 = vector.shape_cast %74 : vector<1x64xi1> to vector<1x64xi1>
    %77 = vector.broadcast %76 : vector<1x64xi1> to vector<16x64xi1>
    %78 = vector.broadcast %75 : f32 to vector<16x64xf32>
    %79 = arith.select %77, %1, %78 : vector<16x64xi1>, vector<16x64xf32>
    %80 = arith.addf %65, %79 : vector<16x64xf32>
    %c63_i32 = arith.constant 63 : i32
    %81 = tpu.dynamic_rotate %1 by %c63_i32 dim 1 : vector<16x64xf32>, i32 -> vector<16x64xf32>
    %c1_i32_23 = arith.constant 1 : i32
    %82 = vector.broadcast %c1_i32_23 : i32 to vector<1x64xi32>
    %83 = arith.addi %18, %82 : vector<1x64xi32>
    %c0_i32_24 = arith.constant 0 : i32
    %84 = vector.broadcast %c0_i32_24 : i32 to vector<1x64xi32>
    %85 = arith.cmpi sge, %83, %84 : vector<1x64xi32>
    %c1_i32_25 = arith.constant 1 : i32
    %86 = vector.broadcast %c1_i32_25 : i32 to vector<1x64xi32>
    %87 = arith.addi %18, %86 : vector<1x64xi32>
    %c16_i32_26 = arith.constant 16 : i32
    %88 = vector.broadcast %c16_i32_26 : i32 to vector<1x64xi32>
    %89 = arith.cmpi slt, %87, %88 : vector<1x64xi32>
    %90 = arith.andi %85, %89 : vector<1x64xi1>
    %c0_i32_27 = arith.constant 0 : i32
    %91 = arith.sitofp %c0_i32_27 : i32 to f32
    %92 = vector.shape_cast %90 : vector<1x64xi1> to vector<1x64xi1>
    %93 = vector.broadcast %92 : vector<1x64xi1> to vector<16x64xi1>
    %94 = vector.broadcast %91 : f32 to vector<16x64xf32>
    %95 = arith.select %93, %81, %94 : vector<16x64xi1>, vector<16x64xf32>
    %96 = arith.addf %80, %95 : vector<16x64xf32>
    %c62_i32 = arith.constant 62 : i32
    %97 = tpu.dynamic_rotate %1 by %c62_i32 dim 1 : vector<16x64xf32>, i32 -> vector<16x64xf32>
    %c2_i32_28 = arith.constant 2 : i32
    %98 = vector.broadcast %c2_i32_28 : i32 to vector<1x64xi32>
    %99 = arith.addi %18, %98 : vector<1x64xi32>
    %c0_i32_29 = arith.constant 0 : i32
    %100 = vector.broadcast %c0_i32_29 : i32 to vector<1x64xi32>
    %101 = arith.cmpi sge, %99, %100 : vector<1x64xi32>
    %c2_i32_30 = arith.constant 2 : i32
    %102 = vector.broadcast %c2_i32_30 : i32 to vector<1x64xi32>
    %103 = arith.addi %18, %102 : vector<1x64xi32>
    %c16_i32_31 = arith.constant 16 : i32
    %104 = vector.broadcast %c16_i32_31 : i32 to vector<1x64xi32>
    %105 = arith.cmpi slt, %103, %104 : vector<1x64xi32>
    %106 = arith.andi %101, %105 : vector<1x64xi1>
    %c0_i32_32 = arith.constant 0 : i32
    %107 = arith.sitofp %c0_i32_32 : i32 to f32
    %108 = vector.shape_cast %106 : vector<1x64xi1> to vector<1x64xi1>
    %109 = vector.broadcast %108 : vector<1x64xi1> to vector<16x64xi1>
    %110 = vector.broadcast %107 : f32 to vector<16x64xf32>
    %111 = arith.select %109, %97, %110 : vector<16x64xi1>, vector<16x64xf32>
    %112 = arith.addf %96, %111 : vector<16x64xf32>
    %c61_i32 = arith.constant 61 : i32
    %113 = tpu.dynamic_rotate %1 by %c61_i32 dim 1 : vector<16x64xf32>, i32 -> vector<16x64xf32>
    %c3_i32_33 = arith.constant 3 : i32
    %114 = vector.broadcast %c3_i32_33 : i32 to vector<1x64xi32>
    %115 = arith.addi %18, %114 : vector<1x64xi32>
    %c0_i32_34 = arith.constant 0 : i32
    %116 = vector.broadcast %c0_i32_34 : i32 to vector<1x64xi32>
    %117 = arith.cmpi sge, %115, %116 : vector<1x64xi32>
    %c3_i32_35 = arith.constant 3 : i32
    %118 = vector.broadcast %c3_i32_35 : i32 to vector<1x64xi32>
    %119 = arith.addi %18, %118 : vector<1x64xi32>
    %c16_i32_36 = arith.constant 16 : i32
    %120 = vector.broadcast %c16_i32_36 : i32 to vector<1x64xi32>
    %121 = arith.cmpi slt, %119, %120 : vector<1x64xi32>
    %122 = arith.andi %117, %121 : vector<1x64xi1>
    %c0_i32_37 = arith.constant 0 : i32
    %123 = arith.sitofp %c0_i32_37 : i32 to f32
    %124 = vector.shape_cast %122 : vector<1x64xi1> to vector<1x64xi1>
    %125 = vector.broadcast %124 : vector<1x64xi1> to vector<16x64xi1>
    %126 = vector.broadcast %123 : f32 to vector<16x64xf32>
    %127 = arith.select %125, %113, %126 : vector<16x64xi1>, vector<16x64xf32>
    %128 = arith.addf %112, %127 : vector<16x64xf32>
    %c0_38 = arith.constant 0 : index
    %c0_39 = arith.constant 0 : index
    %129 = vector.load %arg2[%c0_38, %c0_39] : memref<16x16xf32, #tpu.memory_space<vmem>>, vector<16x16xf32>
    %cst = arith.constant dense<0.000000e+00> : vector<16x64xf32>
    %130 = tpu.matmul %129, %128, %cst {dimension_numbers = #tpu.dot_dimension_numbers<[1], [0], [0], [1], [0, 0, 1, 1], [], []>} : vector<16x16xf32>, vector<16x64xf32>, vector<16x64xf32> -> vector<16x64xf32>
    %c0_40 = arith.constant 0 : index
    %c0_41 = arith.constant 0 : index
    %c0_42 = arith.constant 0 : index
    %131 = vector.load %arg3[%c0_40, %c0_41, %c0_42] : memref<1x16x64xf32, #tpu.memory_space<vmem>>, vector<1x16x64xf32>
    %132 = vector.shape_cast %131 : vector<1x16x64xf32> to vector<16x64xf32>
    %133 = vector.shape_cast %130 : vector<16x64xf32> to vector<1x16x64xf32>
    tpu.vector_store %arg3[%c0_40, %c0_41, %c0_42], %133 {strides = array<i32>} : memref<1x16x64xf32, #tpu.memory_space<vmem>>, vector<1x16x64xf32>,
    return
  }
  func.func @transform_0(%arg0: i32) -> (i32, i32, i32) {
    %c0_i32 = arith.constant 0 : i32
    %c0_i32_0 = arith.constant 0 : i32
    %c0_i32_1 = arith.constant 0 : i32
    return %arg0, %c0_i32, %c0_i32_0 : i32, i32, i32
  }
  func.func @transform_1(%arg0: i32) -> (i32, i32) {
    %c0_i32 = arith.constant 0 : i32
    %c0_i32_0 = arith.constant 0 : i32
    %c0_i32_1 = arith.constant 0 : i32
    return %c0_i32, %c0_i32_0 : i32, i32
  }
  func.func @transform_2(%arg0: i32) -> (i32, i32, i32) {
    %c0_i32 = arith.constant 0 : i32
    %c0_i32_0 = arith.constant 0 : i32
    %c0_i32_1 = arith.constant 0 : i32
    return %arg0, %c0_i32, %c0_i32_0 : i32, i32, i32
  }
}

</mosaic_0001>

<llo_original>
// kernel: box_filter.1
$region0: #{box_filter.1}
  #allocation0 [shape = 'u32[]', space=smem, size = 0x4, offset = 0x4, fixed_abs, tag = 'smem constant byte address 0x4 - core index']
  #allocation1 [shape = 'u32[144,128]{1,0:T(1,128)}', space=vmem, size = 0x12000, scoped, tag = 'internal scratch']
  %s0 = inlined_call_operand.vmem [shape: f32[2,16,64], index: 0, kind: input, shape index: {}]
  %s1 = inlined_call_operand.vmem [shape: f32[16,16], index: 1, kind: input, shape index: {}]
  %s2 = inlined_call_operand.vmem [shape: f32[2,16,64], index: 2, kind: output, shape index: {}]
  %s3 = sld [smem:[#allocation0]]
  $region41: #{box_filter.1} parent=0
    _
  %s5 = ssub.s32 1, %s3
  %s6 = scalar_select 0, %s5, %s3
  loop: start=0, step=1, limit=4
  $region2: #{box_filter.1} parent=0 // loop_pre_header
    _
  $region3: #{box_filter.1} parent=0 // loop_header
    %s8 = sphi 0, %s12
    %p9 = scmp.ge.s32.totalorder %s8, 4
    %s18 = sphi 0, %s20
    %s21 = sphi 0, %s18
    %s22 = sphi 0, %s21
    %s38 = sphi 0, %s22
    %s42 = sphi 0, %s42
    %s44 = sphi 0, %s42
    %s45 = sphi 0, %s44
    %s59 = sphi 0, %s45
    %s65 = sphi 0, %s67
    %s68 = sphi 0, %s65
    %s69 = sphi 0, %s68
    %s85 = sphi 0, %s69
  $region4: #{box_filter.1} parent=0 // loop_header_branch
    %11 = sbr.rel (%p9) target = $region8
  $region5: #{box_filter.1} parent=0 // loop_body
    %s13 = ssub.s32 %s8, 1
    %s14 = ssub.s32 %s8, 2
    %s15 = sadd.s32 %s8, 1
    %s16 = ssub.s32 %s8, %s15
    %p17 = scmp.eq.s32.totalorder %s16, 0
    %s19 = sadd.s32 %s18, 1
    %s20 = scalar_select %p17, %s18, %s19
    %p23 = pneg %p17
    %p24 = scmp.eq.s32.totalorder %s8, 1
    %p25 = por %p23, %p24
    %p26 = scmp.ne.s32.totalorder %s18, %s21
    %p27 = scmp.eq.s32.totalorder %s8, 0
    %p28 = por %p26, %p27
    %p29 = scmp.ne.s32.totalorder %s18, %s21
    %p30 = scmp.eq.s32.totalorder %s13, 1
    %p31 = por %p29, %p30
    %p32 = scmp.ne.s32.totalorder %s21, %s22
    %p33 = scmp.eq.s32.totalorder %s13, 0
    %p34 = por %p32, %p33
    %p35 = scmp.ne.s32.totalorder %s21, %s22
    %p36 = scmp.eq.s32.totalorder %s14, 1
    %p37 = por %p35, %p36
    %p39 = scmp.ne.s32.totalorder %s22, %s38
    %p40 = scmp.eq.s32.totalorder %s14, 0
    %p41 = por %p39, %p40
    %s43 = sadd.s32 %s42, 1
    %p46 = scmp.eq.s32.totalorder %s8, 1
    %p47 = scmp.ne.s32.totalorder %s42, %s44
    %p48 = scmp.eq.s32.totalorder %s8, 0
    %p49 = por %p47, %p48
    %p50 = scmp.ne.s32.totalorder %s42, %s44
    %p51 = scmp.eq.s32.totalorder %s13, 1
    %p52 = por %p50, %p51
    %p53 = scmp.ne.s32.totalorder %s44, %s45
    %p54 = scmp.eq.s32.totalorder %s13, 0
    %p55 = por %p53, %p54
    %p56 = scmp.ne.s32.totalorder %s44, %s45
    %p57 = scmp.eq.s32.totalorder %s14, 1
    %p58 = por %p56, %p57
    %p60 = scmp.ne.s32.totalorder %s45, %s59
    %p61 = scmp.eq.s32.totalorder %s14, 0
    %p62 = por %p60, %p61
    %s63 = ssub.s32 %s8, %s15
    %p64 = scmp.eq.s32.totalorder %s63, 0
    %s66 = sadd.s32 %s65, 1
    %s67 = scalar_select %p64, %s65, %s66
    %p70 = pneg %p64
    %p71 = scmp.eq.s32.totalorder %s8, 1
    %p72 = por %p70, %p71
    %p73 = scmp.ne.s32.totalorder %s65, %s68
    %p74 = scmp.eq.s32.totalorder %s8, 0
    %p75 = por %p73, %p74
    %p76 = scmp.ne.s32.totalorder %s65, %s68
    %p77 = scmp.eq.s32.totalorder %s13, 1
    %p78 = por %p76, %p77
    %p79 = scmp.ne.s32.totalorder %s68, %s69
    %p80 = scmp.eq.s32.totalorder %s13, 0
    %p81 = por %p79, %p80
    %p82 = scmp.ne.s32.totalorder %s68, %s69
    %p83 = scmp.eq.s32.totalorder %s14, 1
    %p84 = por %p82, %p83
    %p86 = scmp.ne.s32.totalorder %s69, %s85
    %p87 = scmp.eq.s32.totalorder %s14, 0
    %p88 = por %p86, %p87
    %p89 = scmp.le.s32.totalorder 1, %s8
    %p90 = scmp.lt.s32.totalorder %s8, 3
    %p91 = pnand %p89, %p90
    %p92 = pneg %p91
    // Predicated region
    $region9: #{box_filter.1} parent=5 // pred_check
      _
    $region10: #{box_filter.1} parent=5 // pred_check_branch
      %94 = sbr.rel (%p91) target = $region12
    $region11: #{box_filter.1} parent=5 // pred_region
      %s95 = ssub.s32 %s8, 1
      // Predicated region
      $region13: #{box_filter.1} parent=11 // pred_check
        %p96 = pneg %p55
      $region14: #{box_filter.1} parent=11 // pred_check_branch
        %98 = sbr.rel (%p96) target = $region16
      $region15: #{box_filter.1} parent=11 // pred_region
        _
      $region16: #{box_filter.1} parent=11 // pred_fallthru
        _
    $region12: #{box_filter.1} parent=5 // pred_fallthru
      _
    %p99 = scmp.lt.s32.totalorder %s8, 2
    // Predicated region
    $region17: #{box_filter.1} parent=5 // pred_check
      %p100 = pneg %p99
    $region18: #{box_filter.1} parent=5 // pred_check_branch
      %102 = sbr.rel (%p100) target = $region20
    $region19: #{box_filter.1} parent=5 // pred_region
      // Predicated region
      $region21: #{box_filter.1} parent=19 // pred_check
        %p103 = pneg %p28
      $region22: #{box_filter.1} parent=19 // pred_check_branch
        %105 = sbr.rel (%p103) target = $region24
      $region23: #{box_filter.1} parent=19 // pred_region
        %p106 = scmp.lt.s32.totalorder %s8, 1
        %s107 = scalar_select %p106, %s8, 1
        %s108 = smul.addr %s107, 2
        %s109 = smul.addr %s108, 8
        %s110 = scalar_lea.vmem %s0, %s109
      $region24: #{box_filter.1} parent=19 // pred_fallthru
        _
    $region20: #{box_filter.1} parent=5 // pred_fallthru
      _
    %p111 = scmp.le.s32.totalorder 1, %s8
    %p112 = scmp.lt.s32.totalorder %s8, 3
    %p113 = pnand %p111, %p112
    %p114 = pneg %p113
    // Predicated region
    $region25: #{box_filter.1} parent=5 // pred_check
      _
    $region26: #{box_filter.1} parent=5 // pred_check_branch
      %116 = sbr.rel (%p113) target = $region28
    $region27: #{box_filter.1} parent=5 // pred_region
      %s117 = ssub.s32 %s8, 1
      %p118 = scmp.lt.s32.totalorder %s13, 1
      %s119 = scalar_select %p118, %s13, 1
      %s120 = smul.addr %s119, 2
      %s121 = smul.addr %s120, 8
      %s122 = scalar_lea.vmem %s0, %s121
      %p123 = pneg %p34
      %p124 = pneg %p31
      %p125 = pneg %p55
      %p126 = pneg %p52
      %p127 = pneg %p81
      %p128 = pneg %p78
      %p129 = scmp.lt.s32.totalorder %s13, 1
      %s130 = scalar_select %p129, %s13, 1
      %s131 = smul.addr %s130, 2
      %s132 = smul.addr %s131, 8
      %s133 = scalar_lea.vmem %s2, %s132
      %p134 = scmp.lt.s32.totalorder %s13, 1
      %s135 = scalar_select %p134, %s13, 1
      %s136 = smul.addr %s135, 2
      %s137 = smul.addr %s136, 8
      %s138 = scalar_lea.vmem %s0, %s137
      %p139 = scmp.lt.s32.totalorder %s13, 1
      %s140 = scalar_select %p139, %s13, 1
      %s141 = smul.addr %s140, 2
      %s142 = smul.addr %s141, 8
      %s143 = scalar_lea.vmem %s2, %s142
      %v144 = vld [vmem:[%s138] sm:$0xff]
      %v145 = vld [vmem:[%s138 + $0x8] sm:$0xff]
      %v146 = vlaneseq
      %v147 = vand.u32 %v146, 127
      %vm148 = vcmp.lt.s32.totalorder %v147, 0
      %v149 = vsub.s32 0, %v147
      %v150 = vsel %vm148, %v149, %v147
      %v151 = vshrl.u32 %v150, 4
      %v152 = vand.u32 %v150, 15
      %v153 = vsub.s32 0, %v152
      %v154 = vsel %vm148, %v153, %v152
      %vm155 = vcmp.ne.s32.totalorder %v154, 0
      %vm156 = vcmp.lt.s32.totalorder %v154, 0
      %vm157 = vmand %vm156, %vm155
      %v158 = vadd.s32 %v154, 16
      %v159 = vsel %vm157, %v158, %v154
      %vm160 = vcmask 1048064
      %161 = vrot.lane.b32.xlu0 %v144, 64
      %v162 = vpop.permute.xlu0 %161
      %v163 = vsel %vm160, %v162, %v144
      %164 = vrot.lane.b32.xlu0 %v145, 64
      %v165 = vpop.permute.xlu0 %164
      %v166 = vsel %vm160, %v165, %v145
      %167 = vrot.lane.b32.xlu0 %v163, 64
      %v168 = vpop.permute.xlu0 %167
      %169 = vrot.lane.b32.xlu0 %v166, 64
      %v170 = vpop.permute.xlu0 %169
      %v171 = vsel %vm160, %v168, %v144
      %v172 = vsel %vm160, %v170, %v145
      %v173 = vadd.s32 %v159, 4294967293
      %vm174 = vcmp.ge.s32.totalorder %v173, 0
      %vm175 = vcmp.lt.s32.totalorder %v173, 16
      %vm176 = vmand %vm174, %vm175
      %v177 = vsel %vm176, 1, 0
      %vm178 = vcmp.eq.s32.totalorder %v177, 1
      %181 = vrot.lane.b32.xlu0 %v171, 67
      %v182 = vpop.permute.xlu0 %181
      %183 = vrot.lane.b32.xlu0 %v172, 67
      %v184 = vpop.permute.xlu0 %183
      %v187 = vsel %vm178, %v182, 0.0
      %v188 = vsel %vm178, %v184, 0.0
      %v189 = vadd.s32 %v159, 4294967294
      %vm190 = vcmp.ge.s32.totalorder %v189, 0
      %vm191 = vcmp.lt.s32.totalorder %v189, 16
      %vm192 = vmand %vm190, %vm191
      %v193 = vsel %vm192, 1, 0
      %vm194 = vcmp.eq.s32.totalorder %v193, 1
      %195 = vrot.lane.b32.xlu0 %v171, 66
      %v196 = vpop.permute.xlu0 %195
      %197 = vrot.lane.b32.xlu0 %v172, 66
      %v198 = vpop.permute.xlu0 %197
      %v201 = vsel %vm194, %v196, 0.0
      %v202 = vsel %vm194, %v198, 0.0
      %v203 = vadd.f32 %v187, %v201
      %v204 = vadd.f32 %v188, %v202
      %v205 = vadd.s32 %v159, 4294967295
      %vm206 = vcmp.ge.s32.totalorder %v205, 0
      %vm207 = vcmp.lt.s32.totalorder %v205, 16
      %vm208 = vmand %vm206, %vm207
      %v209 = vsel %vm208, 1, 0
      %vm210 = vcmp.eq.s32.totalorder %v209, 1
      %211 = vrot.lane.b32.xlu0 %v171, 65
      %v212 = vpop.permute.xlu0 %211
      %213 = vrot.lane.b32.xlu0 %v172, 65
      %v214 = vpop.permute.xlu0 %213
      %v217 = vsel %vm210, %v212, 0.0
      %v218 = vsel %vm210, %v214, 0.0
      %v219 = vadd.f32 %v203, %v217
      %v220 = vadd.f32 %v204, %v218
      %vm221 = vcmp.ge.s32.totalorder %v159, 0
      %vm222 = vcmp.lt.s32.totalorder %v159, 16
      %vm223 = vmand %vm221, %vm222
      %v224 = vsel %vm223, 1, 0
      %vm225 = vcmp.eq.s32.totalorder %v224, 1
      %v226 = vsel %vm225, %v144, 0.0
      %v227 = vsel %vm225, %v145, 0.0
      %v228 = vadd.f32 %v219, %v226
      %v229 = vadd.f32 %v220, %v227
      %v230 = vadd.s32 %v159, 1
      %vm231 = vcmp.ge.s32.totalorder %v230, 0
      %vm232 = vcmp.lt.s32.totalorder %v230, 16
      %vm233 = vmand %vm231, %vm232
      %v234 = vsel %vm233, 1, 0
      %vm235 = vcmp.eq.s32.totalorder %v234, 1
      %236 = vrot.lane.b32.xlu0 %v171, 127
      %v237 = vpop.permute.xlu0 %236
      %238 = vrot.lane.b32.xlu0 %v172, 127
      %v239 = vpop.permute.xlu0 %238
      %v242 = vsel %vm235, %v237, 0.0
      %v243 = vsel %vm235, %v239, 0.0
      %v244 = vadd.f32 %v228, %v242
      %v245 = vadd.f32 %v229, %v243
      %v246 = vadd.s32 %v159, 2
      %vm247 = vcmp.ge.s32.totalorder %v246, 0
      %vm248 = vcmp.lt.s32.totalorder %v246, 16
      %vm249 = vmand %vm247, %vm248
      %v250 = vsel %vm249, 1, 0
      %vm251 = vcmp.eq.s32.totalorder %v250, 1
      %252 = vrot.lane.b32.xlu0 %v171, 126
      %v253 = vpop.permute.xlu0 %252
      %254 = vrot.lane.b32.xlu0 %v172, 126
      %v255 = vpop.permute.xlu0 %254
      %v258 = vsel %vm251, %v253, 0.0
      %v259 = vsel %vm251, %v255, 0.0
      %v260 = vadd.f32 %v244, %v258
      %v261 = vadd.f32 %v245, %v259
      %v262 = vadd.s32 %v159, 3
      %vm263 = vcmp.ge.s32.totalorder %v262, 0
      %vm264 = vcmp.lt.s32.totalorder %v262, 16
      %vm265 = vmand %vm263, %vm264
      %v266 = vsel %vm265, 1, 0
      %vm267 = vcmp.eq.s32.totalorder %v266, 1
      %268 = vrot.lane.b32.xlu0 %v171, 125
      %v269 = vpop.permute.xlu0 %268
      %270 = vrot.lane.b32.xlu0 %v172, 125
      %v271 = vpop.permute.xlu0 %270
      %v274 = vsel %vm267, %v269, 0.0
      %v275 = vsel %vm267, %v271, 0.0
      %v276 = vadd.f32 %v260, %v274
      %v277 = vadd.f32 %v261, %v275
      %v278 = vld [vmem:[%s1] sm:$0xff]
      %v279 = vld [vmem:[%s1 + $0x8] sm:$0xff]
      %vm280 = vcmask 130048
      %v282 = vsel %vm280, %v278, 0
      %v285 = vsel %vm280, %v279, 0
      %287 = vmatprep.subr.mxu0 0.0
      %288 = vmatpush1.msra.mxu0 %v276
      %289 = vmatprep.subr.mxu0 0.0
      %290 = vmatpush1.msra.mxu0 %v277
      %291 = vmatprep.subr.mxu0 0.0
      %292 = vmatpush1.msra.mxu0 0.0
      %293 = vmatprep.subr.mxu0 0.0
      %294 = vmatpush1.msra.mxu0 0.0
      %295 = vmatprep.subr.mxu0 0.0
      %296 = vmatpush1.msra.mxu0 0.0
      %297 = vmatprep.subr.mxu0 0.0
      %298 = vmatpush1.msra.mxu0 0.0
      %299 = vmatprep.subr.mxu0 0.0
      %300 = vmatpush1.msra.mxu0 0.0
      %301 = vmatprep.subr.mxu0 0.0
      %302 = vmatpush1.msra.mxu0 0.0
      %303 = vmatprep.subr.mxu0 0.0
      %304 = vmatpush1.msra.mxu0 0.0
      %305 = vmatprep.subr.mxu0 0.0
      %306 = vmatpush1.msra.mxu0 0.0
      %307 = vmatprep.subr.mxu0 0.0
      %308 = vmatpush1.msra.mxu0 0.0
      %309 = vmatprep.subr.mxu0 0.0
      %310 = vmatpush1.msra.mxu0 0.0
      %311 = vmatprep.subr.mxu0 0.0
      %312 = vmatpush1.msra.mxu0 0.0
      %313 = vmatprep.subr.mxu0 0.0
      %314 = vmatpush1.msra.mxu0 0.0
      %315 = vmatprep.subr.mxu0 0.0
      %316 = vmatpush1.msra.mxu0 0.0
      %317 = vmatprep.subr.mxu0 0.0
      %318 = vmatpush1.msra.mxu0 0.0
      %319 = vmatprep.subr.mxu0 0.0
      %320 = vmatpush1.msra.mxu0 0.0
      %321 = vmatprep.subr.mxu0 0.0
      %322 = vmatpush1.msra.mxu0 0.0
      %323 = vmatprep.subr.mxu0 0.0
      %324 = vmatpush1.msra.mxu0 0.0
      %325 = vmatprep.subr.mxu0 0.0
      %326 = vmatpush1.msra.mxu0 0.0
      %327 = vmatprep.subr.mxu0 0.0
      %328 = vmatpush1.msra.mxu0 0.0
      %329 = vmatprep.subr.mxu0 0.0
      %330 = vmatpush1.msra.mxu0 0.0
      %331 = vmatprep.subr.mxu0 0.0
      %332 = vmatpush1.msra.mxu0 0.0
      %333 = vmatprep.subr.mxu0 0.0
      %334 = vmatpush1.msra.mxu0 0.0
      %335 = vmatprep.subr.mxu0 0.0
      %336 = vmatpush1.msra.mxu0 0.0
      %337 = vmatprep.subr.mxu0 0.0
      %338 = vmatpush1.msra.mxu0 0.0
      %339 = vmatprep.subr.mxu0 0.0
      %340 = vmatpush1.msra.mxu0 0.0
      %341 = vmatprep.subr.mxu0 0.0
      %342 = vmatpush1.msra.mxu0 0.0
      %343 = vmatprep.subr.mxu0 0.0
      %344 = vmatpush1.msra.mxu0 0.0
      %345 = vmatprep.subr.mxu0 0.0
      %346 = vmatpush1.msra.mxu0 0.0
      %347 = vmatprep.subr.mxu0 0.0
      %348 = vmatpush1.msra.mxu0 0.0
      %349 = vmatprep.subr.mxu0 0.0
      %350 = vmatpush1.msra.mxu0 0.0
      %351 = vmatprep.mubr.f32.mxu0 0.0
      %352 = vmatmul.mubr.f32.gmra.mrb[0].mxu0 %v282
      %v353 = vpop.f32.mrb[0].mxu0
      %v354 = vadd.f32 0.0, %v353
      %v355 = vpop.f32.mrb[0].mxu0
      %356 = vmatprep.mubr.f32.mxu0 0.0
      %357 = vmatmul.mubr.f32.gmra.mrb[0].mxu0 %v285
      %v358 = vpop.f32.mrb[0].mxu0
      %v359 = vadd.f32 0.0, %v358
      %v360 = vpop.f32.mrb[0].mxu0
      %361 = vdwg.mxu0
      %vm362 = vcmask 523264
      %363 = vst.msk [vmem:[%s143] sm:$0xff] %vm362, %v354
      %364 = vst.msk [vmem:[%s143 + $0x8] sm:$0xff] %vm362, %v359
      %p365 = scmp.lt.s32.totalorder %s13, 1
      %s366 = scalar_select %p365, %s13, 1
      %s367 = smul.addr %s366, 2
      %s368 = smul.addr %s367, 8
      %s369 = scalar_lea.vmem %s2, %s368
      // Predicated region
      $region29: #{box_filter.1} parent=27 // pred_check
        %p370 = pneg %p78
      $region30: #{box_filter.1} parent=27 // pred_check_branch
        %372 = sbr.rel (%p370) target = $region32
      $region31: #{box_filter.1} parent=27 // pred_region
        _
      $region32: #{box_filter.1} parent=27 // pred_fallthru
        _
    $region28: #{box_filter.1} parent=5 // pred_fallthru
      _
    %p373 = scmp.le.s32.totalorder 2, %s8
    // Predicated region
    $region33: #{box_filter.1} parent=5 // pred_check
      %p374 = pneg %p373
    $region34: #{box_filter.1} parent=5 // pred_check_branch
      %376 = sbr.rel (%p374) target = $region36
    $region35: #{box_filter.1} parent=5 // pred_region
      %s377 = ssub.s32 %s8, 2
      // Predicated region
      $region37: #{box_filter.1} parent=35 // pred_check
        %p378 = pneg %p84
      $region38: #{box_filter.1} parent=35 // pred_check_branch
        %380 = sbr.rel (%p378) target = $region40
      $region39: #{box_filter.1} parent=35 // pred_region
        %p381 = scmp.lt.s32.totalorder %s14, 1
        %s382 = scalar_select %p381, %s14, 1
        %s383 = smul.addr %s382, 2
        %s384 = smul.addr %s383, 8
        %s385 = scalar_lea.vmem %s2, %s384
      $region40: #{box_filter.1} parent=35 // pred_fallthru
        _
    $region36: #{box_filter.1} parent=5 // pred_fallthru
      _
  $region6: #{box_filter.1} parent=0 // loop_footer
    %s12 = sadd.s32 1, %s8
  $region7: #{box_filter.1} parent=0 // loop_footer_branch
    %7 = sbr.rel target = $region3
  $region8: #{box_filter.1} parent=0 // loop_exit
    _

</llo_original>
